<compile_context>
chip_gen: v7x
topology: tpu7x:2x2x1
jax: 0.10.0
libtpu: 0.0.40
codegen_flags: <defaults>
</compile_context>

<pallas_src>
import jax
import jax.numpy as jnp
from jax.experimental import pallas as pl
from jax.experimental.pallas import tpu as pltpu

_SUBLANE = 8  # TPU vreg sublane width (second-to-last-dim tile granule)


def _round_up(x: int, m: int) -> int:
    return ((x + m - 1) // m) * m


def _choose_tb(b: int, cin: int, cout: int, *, bytes_per: int = 4,
               vmem_budget: int = 12 << 20, max_tb: int = 4096) -> int:
    """Batch tile for the 2-D kernel.

    Budget (12 MiB) fits v5e's 16 MiB default scoped-VMEM limit, counts W as
    double-buffered, and caps TB at ceil(B/2) so the grid has >= 2 steps
    (megacore sharding on v7x) whenever B is large enough to split.
    """
    if b <= _SUBLANE:
        return b                                   # single full-dim block (legal)
    w_bytes = 2 * cin * cout * bytes_per           # W: 2 buffers even w/ constant index_map
    per_row = 2 * (cin + cout) * bytes_per         # double-buffered x + out tiles
    tb = max(_SUBLANE, (vmem_budget - w_bytes) // max(per_row, 1))
    tb = min(tb, max_tb)
    tb = min(tb, _round_up(pl.cdiv(b, 2), _SUBLANE))   # guarantee >= 2 grid steps
    return max(_SUBLANE, (tb // _SUBLANE) * _SUBLANE)


def _choose_tg(g: int, b: int, cin: int, cout: int, *, bytes_per: int = 4,
               vmem_budget: int = 12 << 20, max_tg: int = 512) -> int:
    """Graph-instance tile for the batched kernel (same budgeting philosophy)."""
    if g <= 1:
        return 1
    per_graph = 2 * (b * cin + cin * cout + b * cout) * bytes_per   # double-buffered
    tg = max(1, vmem_budget // max(per_graph, 1))
    tg = min(tg, max_tg, pl.cdiv(g, 2))            # >= 2 grid steps -> both v7x TCs
    return max(1, tg)


# ----------------------------------------------------------------------------
# Kernels
# ----------------------------------------------------------------------------

def _update_graph_kernel(x_ref, w_ref, o_ref):
    # MXU matmul on the (TB, Cin) x (Cin, Cout) tile, f32 accumulation.
    out = jnp.dot(x_ref[...], w_ref[...], preferred_element_type=jnp.float32)
    # L1 norm over out_channels; exact divide (epilogue is nowhere near the
    # critical path of this HBM-bound kernel).
    l1 = jnp.sum(jnp.abs(out), axis=-1, keepdims=True)
    o_ref[...] = (out / jnp.maximum(l1, 1e-12)).astype(o_ref.dtype)


def _update_graph_batched_kernel(x_ref, w_ref, o_ref):
    # (TG, B, Cin) x (TG, Cin, Cout) batched matmul on the MXU.
    out = jnp.einsum("gbi,gio->gbo", x_ref[...], w_ref[...],
                     preferred_element_type=jnp.float32)
    l1 = jnp.sum(jnp.abs(out), axis=-1, keepdims=True)
    o_ref[...] = (out / jnp.maximum(l1, 1e-12)).astype(o_ref.dtype)


# ----------------------------------------------------------------------------
# Wrappers
# ----------------------------------------------------------------------------

def update_graph(x: jax.Array, w: jax.Array) -> jax.Array:
    """Single instance.  x: (B, Cin) f32, w: (Cin, Cout) f32 -> (B, Cout) f32."""
    B, Cin = x.shape
    Cin2, Cout = w.shape
    assert Cin == Cin2, (Cin, Cin2)

    TB = _choose_tb(B, Cin, Cout)
    grid = (pl.cdiv(B, TB),)   # ragged last block: OOB reads unspecified, writes dropped

    cost = pl.CostEstimate(
        flops=2 * B * Cin * Cout,
        transcendentals=0,
        bytes_accessed=4 * (B * Cin + Cin * Cout + B * Cout),
    )

    return pl.pallas_call(
        _update_graph_kernel,
        out_shape=jax.ShapeDtypeStruct((B, Cout), jnp.float32),
        grid_spec=pltpu.PrefetchScalarGridSpec(
            num_scalar_prefetch=0,
            grid=grid,
            in_specs=[
                pl.BlockSpec((TB, Cin), lambda i: (i, 0)),      # x tile per grid step
                pl.BlockSpec((Cin, Cout), lambda i: (0, 0)),    # W resident
            ],
            out_specs=pl.BlockSpec((TB, Cout), lambda i: (i, 0)),  # true Cout: no write amp
        ),
        compiler_params=pltpu.CompilerParams(
            dimension_semantics=("parallel",),
        ),
        cost_estimate=cost,
    )(x, w)


def update_graph_batched(x: jax.Array, w: jax.Array) -> jax.Array:
    """Many graph instances in one pallas_call.

    x: (G, B, Cin) f32, w: (G, Cin, Cout) f32 -> (G, B, Cout) f32, each instance
    L1-normalized along its own out_channels axis (identical to running the
    PyTorch module G times).
    """
    G, B, Cin = x.shape
    G2, Cin2, Cout = w.shape
    assert G == G2 and Cin == Cin2, (x.shape, w.shape)

    TG = _choose_tg(G, B, Cin, Cout)
    grid = (pl.cdiv(G, TG),)

    cost = pl.CostEstimate(
        flops=2 * G * B * Cin * Cout,
        transcendentals=0,
        bytes_accessed=4 * G * (B * Cin + Cin * Cout + B * Cout),
    )

    return pl.pallas_call(
        _update_graph_batched_kernel,
        out_shape=jax.ShapeDtypeStruct((G, B, Cout), jnp.float32),
        grid_spec=pltpu.PrefetchScalarGridSpec(
            num_scalar_prefetch=0,
            grid=grid,
            in_specs=[
                pl.BlockSpec((TG, B, Cin), lambda g: (g, 0, 0)),
                pl.BlockSpec((TG, Cin, Cout), lambda g: (g, 0, 0)),
            ],
            out_specs=pl.BlockSpec((TG, B, Cout), lambda g: (g, 0, 0)),
        ),
        compiler_params=pltpu.CompilerParams(
            dimension_semantics=("parallel",),
        ),
        cost_estimate=cost,
    )(x, w)


# ----------------------------------------------------------------------------
# References (pure JAX, HIGHEST-precision matmul as ground truth)
# ----------------------------------------------------------------------------

def update_graph_ref(x, w):
    out = jnp.dot(x, w, precision=jax.lax.Precision.HIGHEST)
    l1 = jnp.sum(jnp.abs(out), axis=-1, keepdims=True)
    return out / jnp.maximum(l1, 1e-12)


def update_graph_batched_ref(x, w):
    out = jnp.einsum("gbi,gio->gbo", x, w, precision=jax.lax.Precision.HIGHEST)
    l1 = jnp.sum(jnp.abs(out), axis=-1, keepdims=True)
    return out / jnp.maximum(l1, 1e-12)


if __name__ == "__main__":
    key = jax.random.PRNGKey(0)

    # Single-instance forward at the module's shape (Linear(32, 32, bias=False))
    # plus a larger/ragged shape to exercise batch tiling and the partial block.
    for (B, Cin, Cout) in [(8, 32, 32), (300, 48, 40)]:
        key, kx, kw = jax.random.split(key, 3)
        x = jax.random.normal(kx, (B, Cin), dtype=jnp.float32)
        W = jax.random.normal(kw, (Cin, Cout), dtype=jnp.float32)  # fc.weight = W.T

        out = jax.block_until_ready(update_graph(x, W))
        ref = update_graph_ref(x, W)

        assert out.shape == (B, Cout)
        assert jnp.allclose(out, ref, atol=1e-3, rtol=1e-3), (
            (B, Cin, Cout), float(jnp.max(jnp.abs(out - ref)))
        )

    # Batched mode: many tiny UpdateGraph instances per pallas_call — the
    # recommended way to run the 8x32x32 production shape.
    G, B, Cin, Cout = 16, 8, 32, 32
    key, kx, kw = jax.random.split(key, 3)
    xg = jax.random.normal(kx, (G, B, Cin), dtype=jnp.float32)
    wg = jax.random.normal(kw, (G, Cin, Cout), dtype=jnp.float32)

    outg = jax.block_until_ready(update_graph_batched(xg, wg))
    refg = update_graph_batched_ref(xg, wg)

    assert outg.shape == (G, B, Cout)
    assert jnp.allclose(outg, refg, atol=1e-3, rtol=1e-3), (
        float(jnp.max(jnp.abs(outg - refg)))
    )

    print("KERNEL_OK")
</pallas_src>

<mosaic_0001>
module attributes {stable_mosaic.version = 11 : i64} {
  func.func @_update_graph_kernel(%arg0: i32, %arg1: memref<8x32xf32, #tpu.memory_space<vmem>>, %arg2: memref<32x32xf32, #tpu.memory_space<vmem>>, %arg3: memref<8x32xf32, #tpu.memory_space<vmem>>) attributes {dimension_semantics = [#tpu.dimension_semantics<parallel>], iteration_bounds = array<i64: 1>, scalar_prefetch = 0 : i64, scratch_operands = 0 : i64, tpu.core_type = #tpu.core_type<tc>, window_params = [{transform_indices = @transform_0, window_bounds = array<i64: 8, 32>}, {pipeline_mode = #tpu.pipeline_mode<synchronous>, transform_indices = @transform_1, window_bounds = array<i64: 32, 32>}, {transform_indices = @transform_2, window_bounds = array<i64: 8, 32>}]} {
    %c0 = arith.constant 0 : index
    %c0_0 = arith.constant 0 : index
    %0 = vector.load %arg1[%c0, %c0_0] : memref<8x32xf32, #tpu.memory_space<vmem>>, vector<8x32xf32>
    %c0_1 = arith.constant 0 : index
    %c0_2 = arith.constant 0 : index
    %1 = vector.load %arg2[%c0_1, %c0_2] : memref<32x32xf32, #tpu.memory_space<vmem>>, vector<32x32xf32>
    %cst = arith.constant dense<0.000000e+00> : vector<8x32xf32>
    %2 = tpu.matmul %0, %1, %cst {dimension_numbers = #tpu.dot_dimension_numbers<[1], [0], [0], [1], [0, 0, 1, 1], [], []>} : vector<8x32xf32>, vector<32x32xf32>, vector<8x32xf32> -> vector<8x32xf32>
    %3 = math.absf %2 : vector<8x32xf32>
    %cst_3 = arith.constant dense<0.000000e+00> : vector<8xf32>
    %4 = vector.multi_reduction <add>, %3, %cst_3 [1] : vector<8x32xf32> to vector<8xf32>
    %5 = vector.shape_cast %4 : vector<8xf32> to vector<8x1xf32>
    %cst_4 = arith.constant 9.99999996E-13 : f32
    %6 = vector.broadcast %cst_4 : f32 to vector<8x1xf32>
    %7 = arith.maximumf %5, %6 : vector<8x1xf32>
    %8 = vector.broadcast %7 : vector<8x1xf32> to vector<8x32xf32>
    %9 = arith.divf %2, %8 : vector<8x32xf32>
    %c0_5 = arith.constant 0 : index
    %c0_6 = arith.constant 0 : index
    %10 = vector.load %arg3[%c0_5, %c0_6] : memref<8x32xf32, #tpu.memory_space<vmem>>, vector<8x32xf32>
    tpu.vector_store %arg3[%c0_5, %c0_6], %9 {strides = array<i32>} : memref<8x32xf32, #tpu.memory_space<vmem>>, vector<8x32xf32>,
    return
  }
  func.func @transform_0(%arg0: i32) -> (i32, i32) {
    %c0_i32 = arith.constant 0 : i32
    %c0_i32_0 = arith.constant 0 : i32
    return %arg0, %c0_i32 : i32, i32
  }
  func.func @transform_1(%arg0: i32) -> (i32, i32) {
    %c0_i32 = arith.constant 0 : i32
    %c0_i32_0 = arith.constant 0 : i32
    %c0_i32_1 = arith.constant 0 : i32
    return %c0_i32, %c0_i32_0 : i32, i32
  }
  func.func @transform_2(%arg0: i32) -> (i32, i32) {
    %c0_i32 = arith.constant 0 : i32
    %c0_i32_0 = arith.constant 0 : i32
    return %arg0, %c0_i32 : i32, i32
  }
}

</mosaic_0001>

<llo_original>
// kernel: tpu_custom_call.1
$region0: #{tpu_custom_call.1}
  #allocation0 [shape = 'u32[]', space=smem, size = 0x4, offset = 0x4, fixed_abs, tag = 'smem constant byte address 0x4 - core index']
  #allocation1 [shape = 'u32[144,128]{1,0:T(1,128)}', space=vmem, size = 0x12000, scoped, tag = 'internal scratch']
  %s0 = inlined_call_operand.hbm [shape: f32[8,32], index: 0, kind: input, shape index: {}]
  %s1 = inlined_call_operand.hbm [shape: f32[32,32], index: 1, kind: input, shape index: {}]
  %s2 = inlined_call_operand.hbm [shape: f32[8,32], index: 2, kind: output, shape index: {}]
  %s3 = sld [smem:[#allocation0]]
  $region26: #{tpu_custom_call.1} parent=0
    _
  %s5 = ssub.s32 1, %s3
  %s6 = scalar_select 0, %s5, %s3
  $region1: #{tpu_custom_call.1} parent=0
    #allocation2 [shape = 'u8[4096]{0}', space=vmem, size = 0x1000, scoped, tag = 'input window, operand 0, single buffered']
    #allocation3 [shape = 's32[1]{0}', space=sflag, size = 0x4, scoped, tag = 'scoped memory for tpu_custom_call.1']
    #allocation4 [shape = 's32[1]{0}', space=sflag, size = 0x4, scoped, tag = 'scoped memory for tpu_custom_call.1']
    #allocation5 [shape = 'u8[16384]{0}', space=vmem, size = 0x4000, scoped, tag = 'input window, operand 1, single buffered']
    #allocation6 [shape = 's32[1]{0}', space=sflag, size = 0x4, scoped, tag = 'scoped memory for tpu_custom_call.1']
    #allocation7 [shape = 'u8[4096]{0}', space=vmem, size = 0x1000, scoped, tag = 'output window, operand 0, single buffered']
    %7 = vsyncpa [#allocation3], 0
    %8 = vsyncpa [#allocation6], 0
    %9 = vsyncpa [#allocation4], 0
    // Predicated region
    $region2: #{tpu_custom_call.1} parent=1 // pred_check
      _
    $region3: #{tpu_custom_call.1} parent=1 // pred_check_branch
      %11 = sbr.rel (0) target = $region5
    $region4: #{tpu_custom_call.1} parent=1 // pred_region
      %s13 = ssub.s32 128, 128
      %14 = vsyncadd [#allocation3], %s13
      %s16 = sshll.u32 [#allocation2], 4
      %s17 = int_to_ptr.vmem [resolvable:$true] %s16
      %19 = dma.hbm_to_vmem [thread:$0]  %s0, 128, %s17, [#allocation3]
    $region5: #{tpu_custom_call.1} parent=1 // pred_fallthru
      _
    // Predicated region
    $region6: #{tpu_custom_call.1} parent=1 // pred_check
      _
    $region7: #{tpu_custom_call.1} parent=1 // pred_check_branch
      %21 = sbr.rel (0) target = $region9
    $region8: #{tpu_custom_call.1} parent=1 // pred_region
      %s23 = ssub.s32 512, 512
      %24 = vsyncadd [#allocation6], %s23
      %s25 = sshll.u32 [#allocation5], 4
      %s26 = int_to_ptr.vmem [resolvable:$true] %s25
      %31 = dma.hbm_to_vmem [thread:$0]  %s1, 512, %s26, [#allocation6], 128, 128, 8
    $region9: #{tpu_custom_call.1} parent=1 // pred_fallthru
      _
    // Predicated region
    $region10: #{tpu_custom_call.1} parent=1 // pred_check
      _
    $region11: #{tpu_custom_call.1} parent=1 // pred_check_branch
      %33 = sbr.rel (0) target = $region13
    $region12: #{tpu_custom_call.1} parent=1 // pred_region
      %34 = dma.done [#allocation3], 128
    $region13: #{tpu_custom_call.1} parent=1 // pred_fallthru
      _
    // Predicated region
    $region14: #{tpu_custom_call.1} parent=1 // pred_check
      _
    $region15: #{tpu_custom_call.1} parent=1 // pred_check_branch
      %36 = sbr.rel (0) target = $region17
    $region16: #{tpu_custom_call.1} parent=1 // pred_region
      %37 = dma.done [#allocation6], 512
    $region17: #{tpu_custom_call.1} parent=1 // pred_fallthru
      _
    %v38 = vld [vmem:[#allocation2] sm:$0xff]
    %v39 = vld [vmem:[#allocation5] sm:$0xff]
    %v40 = vld [vmem:[#allocation5 + $0x8] sm:$0xff]
    %v41 = vld [vmem:[#allocation5 + $0x10] sm:$0xff]
    %v42 = vld [vmem:[#allocation5 + $0x18] sm:$0xff]
    %vm43 = vcmask 261120
    %v45 = vsel %vm43, %v38, 0
    %47 = vmatprep.subr.mxu0 0.0
    %48 = vmatpush1.msra.mxu0 %v39
    %49 = vmatprep.subr.mxu0 0.0
    %50 = vmatpush1.msra.mxu0 %v40
    %51 = vmatprep.subr.mxu0 0.0
    %52 = vmatpush1.msra.mxu0 %v41
    %53 = vmatprep.subr.mxu0 0.0
    %54 = vmatpush1.msra.mxu0 %v42
    %55 = vmatprep.subr.mxu0 0.0
    %56 = vmatpush1.msra.mxu0 0.0
    %57 = vmatprep.subr.mxu0 0.0
    %58 = vmatpush1.msra.mxu0 0.0
    %59 = vmatprep.subr.mxu0 0.0
    %60 = vmatpush1.msra.mxu0 0.0
    %61 = vmatprep.subr.mxu0 0.0
    %62 = vmatpush1.msra.mxu0 0.0
    %63 = vmatprep.subr.mxu0 0.0
    %64 = vmatpush1.msra.mxu0 0.0
    %65 = vmatprep.subr.mxu0 0.0
    %66 = vmatpush1.msra.mxu0 0.0
    %67 = vmatprep.subr.mxu0 0.0
    %68 = vmatpush1.msra.mxu0 0.0
    %69 = vmatprep.subr.mxu0 0.0
    %70 = vmatpush1.msra.mxu0 0.0
    %71 = vmatprep.subr.mxu0 0.0
    %72 = vmatpush1.msra.mxu0 0.0
    %73 = vmatprep.subr.mxu0 0.0
    %74 = vmatpush1.msra.mxu0 0.0
    %75 = vmatprep.subr.mxu0 0.0
    %76 = vmatpush1.msra.mxu0 0.0
    %77 = vmatprep.subr.mxu0 0.0
    %78 = vmatpush1.msra.mxu0 0.0
    %79 = vmatprep.subr.mxu0 0.0
    %80 = vmatpush1.msra.mxu0 0.0
    %81 = vmatprep.subr.mxu0 0.0
    %82 = vmatpush1.msra.mxu0 0.0
    %83 = vmatprep.subr.mxu0 0.0
    %84 = vmatpush1.msra.mxu0 0.0
    %85 = vmatprep.subr.mxu0 0.0
    %86 = vmatpush1.msra.mxu0 0.0
    %87 = vmatprep.subr.mxu0 0.0
    %88 = vmatpush1.msra.mxu0 0.0
    %89 = vmatprep.subr.mxu0 0.0
    %90 = vmatpush1.msra.mxu0 0.0
    %91 = vmatprep.subr.mxu0 0.0
    %92 = vmatpush1.msra.mxu0 0.0
    %93 = vmatprep.subr.mxu0 0.0
    %94 = vmatpush1.msra.mxu0 0.0
    %95 = vmatprep.subr.mxu0 0.0
    %96 = vmatpush1.msra.mxu0 0.0
    %97 = vmatprep.subr.mxu0 0.0
    %98 = vmatpush1.msra.mxu0 0.0
    %99 = vmatprep.subr.mxu0 0.0
    %100 = vmatpush1.msra.mxu0 0.0
    %101 = vmatprep.subr.mxu0 0.0
    %102 = vmatpush1.msra.mxu0 0.0
    %103 = vmatprep.subr.mxu0 0.0
    %104 = vmatpush1.msra.mxu0 0.0
    %105 = vmatprep.subr.mxu0 0.0
    %106 = vmatpush1.msra.mxu0 0.0
    %107 = vmatprep.subr.mxu0 0.0
    %108 = vmatpush1.msra.mxu0 0.0
    %109 = vmatprep.subr.mxu0 0.0
    %110 = vmatpush1.msra.mxu0 0.0
    %111 = vmatprep.mubr.f32.mxu0 0.0
    %112 = vmatmul.mubr.f32.gmra.mrb[0].mxu0 %v45
    %v113 = vpop.f32.mrb[0].mxu0
    %v114 = vadd.f32 0.0, %v113
    %v115 = vpop.f32.mrb[0].mxu0
    %116 = vdwg.mxu0
    %v117 = vand.u32 2147483647, %v114
    %v118 = vsel %vm43, %v117, 0.0
    %119 = vadd.xlane.f32.xlu0 %v118
    %v120 = vpop.xlane.xlu0 %119
    %v121 = vmax.f32 %v120, 1e-12
    %v122 = vrcp.pop %v121
    %v123 = vmul.f32 %v114, %v122
    %124 = vst.msk [vmem:[#allocation7] sm:$0xff] %vm43, %v123
    // Predicated region
    $region18: #{tpu_custom_call.1} parent=1 // pred_check
      _
    $region19: #{tpu_custom_call.1} parent=1 // pred_check_branch
      %126 = sbr.rel (0) target = $region21
    $region20: #{tpu_custom_call.1} parent=1 // pred_region
      %s128 = ssub.s32 128, 128
      %129 = vsyncadd [#allocation4], %s128
      %s131 = sshll.u32 [#allocation7], 4
      %s132 = int_to_ptr.vmem [resolvable:$true] %s131
      %134 = dma.vmem_to_hbm [thread:$0]  %s132, 128, %s2, [#allocation4]
    $region21: #{tpu_custom_call.1} parent=1 // pred_fallthru
      _
    // Predicated region
    $region22: #{tpu_custom_call.1} parent=1 // pred_check
      _
    $region23: #{tpu_custom_call.1} parent=1 // pred_check_branch
      %136 = sbr.rel (0) target = $region25
    $region24: #{tpu_custom_call.1} parent=1 // pred_region
      %137 = dma.done [#allocation4], 128
    $region25: #{tpu_custom_call.1} parent=1 // pred_fallthru
      _
    %138 = vsyncpa [#allocation3], 1
    %139 = vsyncpa [#allocation6], 1
    %140 = vsyncpa [#allocation4], 1

</llo_original>
